<compile_context>
chip_gen: v7x
topology: tpu7x:2x2x1
jax: 0.10.0
libtpu: 0.0.40
codegen_flags: <defaults>
</compile_context>

<pallas_src>
import functools

import jax
import jax.numpy as jnp
from jax.experimental import pallas as pl
from jax.experimental.pallas import tpu as pltpu


def _round_up(v: int, n: int) -> int:
    return -(-v // n) * n


def _vmem_capacity_bytes(default: int = 128 << 20) -> int:
    """Best-effort trace-time VMEM capacity query (falls back to 128 MiB)."""
    try:
        info = pltpu.get_tpu_info()
        for name in ("vmem_capacity_bytes", "vmem_bytes", "vmem_size_bytes"):
            v = getattr(info, name, None)
            if v:
                return int(v)
    except Exception:
        pass
    return default


def _adapter_kernel(x_ref, wg_ref, wc_ref, bg_ref, bc_ref, o_ref, *, compute_dtype):
    # x_ref : (tile_m, K)         rows on sublanes, hidden on lanes
    # wg_ref/wc_ref : (C, K)      per-layer gate / cell weight halves (PyTorch layout)
    # bg_ref/bc_ref : (1, C)
    # o_ref : (tile_m, C)         this layer's activated output tile
    x = x_ref[...]
    wg = wg_ref[...]
    wc = wc_ref[...]
    if compute_dtype is not None:
        # bf16 MXU path on v6e/v7x; accumulation stays f32.
        x = x.astype(compute_dtype)
        wg = wg.astype(compute_dtype)
        wc = wc.astype(compute_dtype)

    # Contract K (axis 1 of x with axis 1 of W) -> no transposed weight copy needed.
    dn = (((1,), (1,)), ((), ()))
    y1 = jax.lax.dot_general(x, wg, dimension_numbers=dn,
                             preferred_element_type=jnp.float32)
    y2 = jax.lax.dot_general(x, wc, dimension_numbers=dn,
                             preferred_element_type=jnp.float32)
    y1 = y1 + bg_ref[...].astype(jnp.float32)
    y2 = y2 + bc_ref[...].astype(jnp.float32)

    # Activation math in f32 on the f32 accumulator (EUP-friendly on all gens).
    o_ref[...] = (jax.nn.sigmoid(y1) * jnp.tanh(y2)).astype(o_ref.dtype)


def hidden_state_adapter(x, weight, bias, *, num_layers: int, close_hidden_size: int,
                         max_tile_m: int | None = None, compute_dtype=None):
    """x: (..., open_hidden); weight: (2*L*C, open_hidden) [PyTorch layout]; bias: (2*L*C,).

    Returns (L, *leading_dims, C), matching the module's permute-to-front of the
    num_layers axis (the kernel writes L-major directly; no post-hoc transpose).
    """
    *lead, open_hidden = x.shape
    L, C, K = num_layers, close_hidden_size, open_hidden
    gate_width = L * C
    assert weight.shape == (2 * gate_width, K), weight.shape
    assert bias.shape == (2 * gate_width,), bias.shape

    m = 1
    for d in lead:
        m *= d
    x2d = x.reshape(m, K)

    # Contiguous halves of the PyTorch-layout weight/bias; these reshapes are
    # free metadata ops (no transpose, no extra HBM pass over W).
    wg = weight[:gate_width].reshape(L, C, K)
    wc = weight[gate_width:].reshape(L, C, K)
    bg = bias[:gate_width].reshape(L, 1, C)
    bc = bias[gate_width:].reshape(L, 1, C)

    # Per-generation tile sizing: v7x has 64 MiB VMEM -> smaller M tiles.
    vmem_cap = _vmem_capacity_bytes()
    if max_tile_m is None:
        max_tile_m = 512 if vmem_cap >= (96 << 20) else 256

    tile_m = min(max_tile_m, _round_up(m, 8))   # multiple of 8 (sublane rule)
    m_pad = _round_up(m, tile_m)                # remainder handled by row padding
    if m_pad != m:
        x2d = jnp.pad(x2d, ((0, m_pad - m), (0, 0)))
    n_m = m_pad // tile_m

    # VMEM budget from actual (layout-padded, double-buffered) buffer sizes + headroom.
    def _tile_bytes(r, c, dt):
        return _round_up(max(r, 1), 8) * _round_up(max(c, 1), 128) * jnp.dtype(dt).itemsize

    per_step = (_tile_bytes(tile_m, K, x2d.dtype)
                + _tile_bytes(tile_m, C, x.dtype)
                + 2 * _tile_bytes(C, K, weight.dtype)
                + 2 * _tile_bytes(1, C, bias.dtype))
    vmem_limit = int(min(max(2 * per_step + (4 << 20), 8 << 20), vmem_cap // 2))

    kernel = functools.partial(_adapter_kernel, compute_dtype=compute_dtype)

    out3 = pl.pallas_call(
        kernel,
        out_shape=jax.ShapeDtypeStruct((L, m_pad, C), x.dtype),
        grid=(L, n_m),
        in_specs=[
            pl.BlockSpec((tile_m, K), lambda l, i: (i, 0)),        # x tile (pipelined over M)
            pl.BlockSpec((None, C, K), lambda l, i: (l, 0, 0)),    # gate weight, layer l
            pl.BlockSpec((None, C, K), lambda l, i: (l, 0, 0)),    # cell weight, layer l
            pl.BlockSpec((None, 1, C), lambda l, i: (l, 0, 0)),    # gate bias,  layer l
            pl.BlockSpec((None, 1, C), lambda l, i: (l, 0, 0)),    # cell bias,  layer l
        ],
        out_specs=pl.BlockSpec((None, tile_m, C), lambda l, i: (l, i, 0)),  # L-major output
        compiler_params=pltpu.CompilerParams(
            dimension_semantics=("parallel", "parallel"),
            vmem_limit_bytes=vmem_limit,
        ),
    )(x2d, wg, wc, bg, bc)

    out = out3[:, :m, :] if m_pad != m else out3
    return out.reshape(L, *lead, C)


if __name__ == "__main__":
    # Module hyperparameters (as in the source file).
    open_hidden_size = 30
    close_hidden_size = 30
    num_layers = 2

    key = jax.random.PRNGKey(0)
    k_x, k_w, k_b = jax.random.split(key, 3)

    # Small input with two leading dims: (batch=2, seq=8, open_hidden=30)
    B, S = 2, 8
    x = jax.random.normal(k_x, (B, S, open_hidden_size), dtype=jnp.float32)

    # Deterministic parameter init (Linear: out=2*L*close, in=open_hidden).
    out_features = 2 * num_layers * close_hidden_size
    bound = 1.0 / (open_hidden_size ** 0.5)
    weight = jax.random.uniform(k_w, (out_features, open_hidden_size),
                                minval=-bound, maxval=bound, dtype=jnp.float32)
    bias = jax.random.uniform(k_b, (out_features,),
                              minval=-bound, maxval=bound, dtype=jnp.float32)

    out = hidden_state_adapter(x, weight, bias,
                               num_layers=num_layers,
                               close_hidden_size=close_hidden_size)
    jax.block_until_ready(out)

    # Pure-JAX reference for sanity.
    y_ref = x @ weight.T + bias
    gw = num_layers * close_hidden_size
    ref = jax.nn.sigmoid(y_ref[..., :gw]) * jnp.tanh(y_ref[..., gw:])
    ref = ref.reshape(B, S, num_layers, close_hidden_size)
    ref = jnp.transpose(ref, (2, 0, 1, 3))

    assert out.shape == (num_layers, B, S, close_hidden_size), out.shape
    assert jnp.allclose(out, ref, atol=1e-5, rtol=1e-5)
    print("KERNEL_OK")
</pallas_src>

<mosaic_0001>
module attributes {stable_mosaic.version = 11 : i64} {
  func.func @_adapter_kernel(%arg0: i32, %arg1: i32, %arg2: memref<16x30xf32, #tpu.memory_space<vmem>>, %arg3: memref<1x30x30xf32, #tpu.memory_space<vmem>>, %arg4: memref<1x30x30xf32, #tpu.memory_space<vmem>>, %arg5: memref<1x1x30xf32, #tpu.memory_space<vmem>>, %arg6: memref<1x1x30xf32, #tpu.memory_space<vmem>>, %arg7: memref<1x16x30xf32, #tpu.memory_space<vmem>>) attributes {dimension_semantics = [#tpu.dimension_semantics<parallel>, #tpu.dimension_semantics<parallel>], iteration_bounds = array<i64: 2, 1>, scalar_prefetch = 0 : i64, scratch_operands = 0 : i64, tpu.core_type = #tpu.core_type<tc>, window_params = [{transform_indices = @transform_0, window_bounds = array<i64: 16, 30>}, {transform_indices = @transform_1, window_bounds = array<i64: 1, 30, 30>}, {transform_indices = @transform_2, window_bounds = array<i64: 1, 30, 30>}, {transform_indices = @transform_3, window_bounds = array<i64: 1, 1, 30>}, {transform_indices = @transform_4, window_bounds = array<i64: 1, 1, 30>}, {transform_indices = @transform_5, window_bounds = array<i64: 1, 16, 30>}]} {
    %c0 = arith.constant 0 : index
    %c0_0 = arith.constant 0 : index
    %0 = vector.load %arg2[%c0, %c0_0] : memref<16x30xf32, #tpu.memory_space<vmem>>, vector<16x30xf32>
    %c0_1 = arith.constant 0 : index
    %c0_2 = arith.constant 0 : index
    %c0_3 = arith.constant 0 : index
    %1 = vector.load %arg3[%c0_1, %c0_2, %c0_3] : memref<1x30x30xf32, #tpu.memory_space<vmem>>, vector<1x30x30xf32>
    %2 = vector.shape_cast %1 : vector<1x30x30xf32> to vector<30x30xf32>
    %c0_4 = arith.constant 0 : index
    %c0_5 = arith.constant 0 : index
    %c0_6 = arith.constant 0 : index
    %3 = vector.load %arg4[%c0_4, %c0_5, %c0_6] : memref<1x30x30xf32, #tpu.memory_space<vmem>>, vector<1x30x30xf32>
    %4 = vector.shape_cast %3 : vector<1x30x30xf32> to vector<30x30xf32>
    %cst = arith.constant dense<0.000000e+00> : vector<16x30xf32>
    %5 = tpu.matmul %0, %2, %cst {dimension_numbers = #tpu.dot_dimension_numbers<[1], [1], [0], [0], [0, 0, 1, 0], [], []>} : vector<16x30xf32>, vector<30x30xf32>, vector<16x30xf32> -> vector<16x30xf32>
    %cst_7 = arith.constant dense<0.000000e+00> : vector<16x30xf32>
    %6 = tpu.matmul %0, %4, %cst_7 {dimension_numbers = #tpu.dot_dimension_numbers<[1], [1], [0], [0], [0, 0, 1, 0], [], []>} : vector<16x30xf32>, vector<30x30xf32>, vector<16x30xf32> -> vector<16x30xf32>
    %c0_8 = arith.constant 0 : index
    %c0_9 = arith.constant 0 : index
    %c0_10 = arith.constant 0 : index
    %7 = vector.load %arg5[%c0_8, %c0_9, %c0_10] : memref<1x1x30xf32, #tpu.memory_space<vmem>>, vector<1x1x30xf32>
    %8 = vector.shape_cast %7 : vector<1x1x30xf32> to vector<1x30xf32>
    %9 = vector.broadcast %8 : vector<1x30xf32> to vector<16x30xf32>
    %10 = arith.addf %5, %9 : vector<16x30xf32>
    %c0_11 = arith.constant 0 : index
    %c0_12 = arith.constant 0 : index
    %c0_13 = arith.constant 0 : index
    %11 = vector.load %arg6[%c0_11, %c0_12, %c0_13] : memref<1x1x30xf32, #tpu.memory_space<vmem>>, vector<1x1x30xf32>
    %12 = vector.shape_cast %11 : vector<1x1x30xf32> to vector<1x30xf32>
    %13 = vector.broadcast %12 : vector<1x30xf32> to vector<16x30xf32>
    %14 = arith.addf %6, %13 : vector<16x30xf32>
    %15 = arith.negf %10 : vector<16x30xf32>
    %16 = math.exp %15 : vector<16x30xf32>
    %cst_14 = arith.constant 1.000000e+00 : f32
    %17 = vector.broadcast %cst_14 : f32 to vector<16x30xf32>
    %18 = arith.addf %17, %16 : vector<16x30xf32>
    %19 = arith.divf %17, %18 : vector<16x30xf32>
    %20 = math.tanh %14 : vector<16x30xf32>
    %21 = arith.mulf %19, %20 : vector<16x30xf32>
    %c0_15 = arith.constant 0 : index
    %c0_16 = arith.constant 0 : index
    %c0_17 = arith.constant 0 : index
    %22 = vector.load %arg7[%c0_15, %c0_16, %c0_17] : memref<1x16x30xf32, #tpu.memory_space<vmem>>, vector<1x16x30xf32>
    %23 = vector.shape_cast %22 : vector<1x16x30xf32> to vector<16x30xf32>
    %24 = vector.shape_cast %21 : vector<16x30xf32> to vector<1x16x30xf32>
    tpu.vector_store %arg7[%c0_15, %c0_16, %c0_17], %24 {strides = array<i32>} : memref<1x16x30xf32, #tpu.memory_space<vmem>>, vector<1x16x30xf32>,
    return
  }
  func.func @transform_0(%arg0: i32, %arg1: i32) -> (i32, i32) {
    %c0_i32 = arith.constant 0 : i32
    %c0_i32_0 = arith.constant 0 : i32
    return %arg1, %c0_i32 : i32, i32
  }
  func.func @transform_1(%arg0: i32, %arg1: i32) -> (i32, i32, i32) {
    %c0_i32 = arith.constant 0 : i32
    %c0_i32_0 = arith.constant 0 : i32
    %c0_i32_1 = arith.constant 0 : i32
    return %arg0, %c0_i32, %c0_i32_0 : i32, i32, i32
  }
  func.func @transform_2(%arg0: i32, %arg1: i32) -> (i32, i32, i32) {
    %c0_i32 = arith.constant 0 : i32
    %c0_i32_0 = arith.constant 0 : i32
    %c0_i32_1 = arith.constant 0 : i32
    return %arg0, %c0_i32, %c0_i32_0 : i32, i32, i32
  }
  func.func @transform_3(%arg0: i32, %arg1: i32) -> (i32, i32, i32) {
    %c0_i32 = arith.constant 0 : i32
    %c0_i32_0 = arith.constant 0 : i32
    %c0_i32_1 = arith.constant 0 : i32
    return %arg0, %c0_i32, %c0_i32_0 : i32, i32, i32
  }
  func.func @transform_4(%arg0: i32, %arg1: i32) -> (i32, i32, i32) {
    %c0_i32 = arith.constant 0 : i32
    %c0_i32_0 = arith.constant 0 : i32
    %c0_i32_1 = arith.constant 0 : i32
    return %arg0, %c0_i32, %c0_i32_0 : i32, i32, i32
  }
  func.func @transform_5(%arg0: i32, %arg1: i32) -> (i32, i32, i32) {
    %c0_i32 = arith.constant 0 : i32
    %c0_i32_0 = arith.constant 0 : i32
    return %arg0, %arg1, %c0_i32 : i32, i32, i32
  }
}

</mosaic_0001>

<llo_original>
// kernel: tpu_custom_call.1
$region0: #{tpu_custom_call.1}
  #allocation0 [shape = 'u32[]', space=smem, size = 0x4, offset = 0x4, fixed_abs, tag = 'smem constant byte address 0x4 - core index']
  #allocation1 [shape = 'u32[144,128]{1,0:T(1,128)}', space=vmem, size = 0x12000, scoped, tag = 'internal scratch']
  %s0 = inlined_call_operand.vmem [shape: f32[16,30], index: 0, kind: input, shape index: {}]
  %s1 = inlined_call_operand.vmem [shape: f32[2,30,30], index: 1, kind: input, shape index: {}]
  %s2 = inlined_call_operand.vmem [shape: f32[2,30,30], index: 2, kind: input, shape index: {}]
  %s3 = inlined_call_operand.vmem [shape: f32[2,1,30], index: 3, kind: input, shape index: {}]
  %s4 = inlined_call_operand.vmem [shape: f32[2,1,30], index: 4, kind: input, shape index: {}]
  %s5 = inlined_call_operand.hbm [shape: f32[2,16,30], index: 5, kind: output, shape index: {}]
  %s6 = sld [smem:[#allocation0]]
  $region53: #{tpu_custom_call.1} parent=0
    _
  %s8 = ssub.s32 1, %s6
  %s9 = scalar_select 0, %s8, %s6
  $region1: #{tpu_custom_call.1} parent=0
    #allocation2 [shape = 'u8[16384]{0}', space=vmem, size = 0x4000, scoped, tag = 'output window, operand 0']
    #allocation3 [shape = 's32[2]{0}', space=sflag, size = 0x8, scoped, tag = 'scoped memory for tpu_custom_call.1']
    %10 = vsyncpa [#allocation3], 0
    %s11 = scalar_lea.sflag [#allocation3], 1
    %12 = vsyncpa %s11, 0
    loop: start=0, step=1, limit=4
    $region2: #{tpu_custom_call.1} parent=1 // loop_pre_header
      _
    $region3: #{tpu_custom_call.1} parent=1 // loop_header
      %s14 = sphi 0, %s18
      %p15 = scmp.ge.s32.totalorder %s14, 4
      %s21 = sphi 0, %s33
      %s22 = sphi 0, %s29
      %s23 = sphi 0, %s21
      %s24 = sphi 0, %s22
      %s25 = sphi 0, %s23
      %s26 = sphi 0, %s24
      %s36 = sphi 0, %s38
      %s39 = sphi 0, %s36
      %s40 = sphi 0, %s39
      %s56 = sphi 0, %s40
      %s62 = sphi 0, %s64
      %s65 = sphi 0, %s62
      %s66 = sphi 0, %s65
      %s82 = sphi 0, %s66
      %s88 = sphi 0, %s90
      %s91 = sphi 0, %s88
      %s92 = sphi 0, %s91
      %s108 = sphi 0, %s92
      %s114 = sphi 0, %s116
      %s117 = sphi 0, %s114
      %s118 = sphi 0, %s117
      %s134 = sphi 0, %s118
      %s140 = sphi 0, %s142
      %s143 = sphi 0, %s140
      %s144 = sphi 0, %s143
      %s160 = sphi 0, %s144
      %s168 = sphi 0, %s170
      %s171 = sphi 0, %s168
      %s172 = sphi 0, %s171
      %s188 = sphi 0, %s172
    $region4: #{tpu_custom_call.1} parent=1 // loop_header_branch
      %17 = sbr.rel (%p15) target = $region8
    $region5: #{tpu_custom_call.1} parent=1 // loop_body
      %s19 = ssub.s32 %s14, 1
      %s20 = ssub.s32 %s14, 2
      %s27 = sadd.s32 1, %s22
      %p28 = scmp.ge.s32.totalorder %s27, 1
      %s29 = scalar_select %p28, 0, %s27
      %s30 = sadd.s32 1, %s21
      %s31 = scalar_select %p28, %s30, %s21
      %p32 = scmp.ge.s32.totalorder %s31, 2
      %s33 = scalar_select %p32, 0, %s31
      %s34 = ssub.s32 %s22, %s29
      %p35 = scmp.eq.s32.totalorder %s34, 0
      %s37 = sadd.s32 %s36, 1
      %s38 = scalar_select %p35, %s36, %s37
      %p41 = pneg %p35
      %p42 = scmp.eq.s32.totalorder %s14, 1
      %p43 = por %p41, %p42
      %p44 = scmp.ne.s32.totalorder %s36, %s39
      %p45 = scmp.eq.s32.totalorder %s14, 0
      %p46 = por %p44, %p45
      %p47 = scmp.ne.s32.totalorder %s36, %s39
      %p48 = scmp.eq.s32.totalorder %s19, 1
      %p49 = por %p47, %p48
      %p50 = scmp.ne.s32.totalorder %s39, %s40
      %p51 = scmp.eq.s32.totalorder %s19, 0
      %p52 = por %p50, %p51
      %p53 = scmp.ne.s32.totalorder %s39, %s40
      %p54 = scmp.eq.s32.totalorder %s20, 1
      %p55 = por %p53, %p54
      %p57 = scmp.ne.s32.totalorder %s40, %s56
      %p58 = scmp.eq.s32.totalorder %s20, 0
      %p59 = por %p57, %p58
      %s60 = ssub.s32 %s21, %s33
      %p61 = scmp.eq.s32.totalorder %s60, 0
      %s63 = sadd.s32 %s62, 1
      %s64 = scalar_select %p61, %s62, %s63
      %p67 = pneg %p61
      %p68 = scmp.eq.s32.totalorder %s14, 1
      %p69 = por %p67, %p68
      %p70 = scmp.ne.s32.totalorder %s62, %s65
      %p71 = scmp.eq.s32.totalorder %s14, 0
      %p72 = por %p70, %p71
      %p73 = scmp.ne.s32.totalorder %s62, %s65
      %p74 = scmp.eq.s32.totalorder %s19, 1
      %p75 = por %p73, %p74
      %p76 = scmp.ne.s32.totalorder %s65, %s66
      %p77 = scmp.eq.s32.totalorder %s19, 0
      %p78 = por %p76, %p77
      %p79 = scmp.ne.s32.totalorder %s65, %s66
      %p80 = scmp.eq.s32.totalorder %s20, 1
      %p81 = por %p79, %p80
      %p83 = scmp.ne.s32.totalorder %s66, %s82
      %p84 = scmp.eq.s32.totalorder %s20, 0
      %p85 = por %p83, %p84
      %s86 = ssub.s32 %s21, %s33
      %p87 = scmp.eq.s32.totalorder %s86, 0
      %s89 = sadd.s32 %s88, 1
      %s90 = scalar_select %p87, %s88, %s89
      %p93 = pneg %p87
      %p94 = scmp.eq.s32.totalorder %s14, 1
      %p95 = por %p93, %p94
      %p96 = scmp.ne.s32.totalorder %s88, %s91
      %p97 = scmp.eq.s32.totalorder %s14, 0
      %p98 = por %p96, %p97
      %p99 = scmp.ne.s32.totalorder %s88, %s91
      %p100 = scmp.eq.s32.totalorder %s19, 1
      %p101 = por %p99, %p100
      %p102 = scmp.ne.s32.totalorder %s91, %s92
      %p103 = scmp.eq.s32.totalorder %s19, 0
      %p104 = por %p102, %p103
      %p105 = scmp.ne.s32.totalorder %s91, %s92
      %p106 = scmp.eq.s32.totalorder %s20, 1
      %p107 = por %p105, %p106
      %p109 = scmp.ne.s32.totalorder %s92, %s108
      %p110 = scmp.eq.s32.totalorder %s20, 0
      %p111 = por %p109, %p110
      %s112 = ssub.s32 %s21, %s33
      %p113 = scmp.eq.s32.totalorder %s112, 0
      %s115 = sadd.s32 %s114, 1
      %s116 = scalar_select %p113, %s114, %s115
      %p119 = pneg %p113
      %p120 = scmp.eq.s32.totalorder %s14, 1
      %p121 = por %p119, %p120
      %p122 = scmp.ne.s32.totalorder %s114, %s117
      %p123 = scmp.eq.s32.totalorder %s14, 0
      %p124 = por %p122, %p123
      %p125 = scmp.ne.s32.totalorder %s114, %s117
      %p126 = scmp.eq.s32.totalorder %s19, 1
      %p127 = por %p125, %p126
      %p128 = scmp.ne.s32.totalorder %s117, %s118
      %p129 = scmp.eq.s32.totalorder %s19, 0
      %p130 = por %p128, %p129
      %p131 = scmp.ne.s32.totalorder %s117, %s118
      %p132 = scmp.eq.s32.totalorder %s20, 1
      %p133 = por %p131, %p132
      %p135 = scmp.ne.s32.totalorder %s118, %s134
      %p136 = scmp.eq.s32.totalorder %s20, 0
      %p137 = por %p135, %p136
      %s138 = ssub.s32 %s21, %s33
      %p139 = scmp.eq.s32.totalorder %s138, 0
      %s141 = sadd.s32 %s140, 1
      %s142 = scalar_select %p139, %s140, %s141
      %p145 = pneg %p139
      %p146 = scmp.eq.s32.totalorder %s14, 1
      %p147 = por %p145, %p146
      %p148 = scmp.ne.s32.totalorder %s140, %s143
      %p149 = scmp.eq.s32.totalorder %s14, 0
      %p150 = por %p148, %p149
      %p151 = scmp.ne.s32.totalorder %s140, %s143
      %p152 = scmp.eq.s32.totalorder %s19, 1
      %p153 = por %p151, %p152
      %p154 = scmp.ne.s32.totalorder %s143, %s144
      %p155 = scmp.eq.s32.totalorder %s19, 0
      %p156 = por %p154, %p155
      %p157 = scmp.ne.s32.totalorder %s143, %s144
      %p158 = scmp.eq.s32.totalorder %s20, 1
      %p159 = por %p157, %p158
      %p161 = scmp.ne.s32.totalorder %s144, %s160
      %p162 = scmp.eq.s32.totalorder %s20, 0
      %p163 = por %p161, %p162
      %s164 = ssub.s32 %s21, %s33
      %s165 = ssub.s32 %s22, %s29
      %s166 = sor.u32 %s164, %s165
      %p167 = scmp.eq.s32.totalorder %s166, 0
      %s169 = sadd.s32 %s168, 1
      %s170 = scalar_select %p167, %s168, %s169
      %p173 = pneg %p167
      %p174 = scmp.eq.s32.totalorder %s14, 1
      %p175 = por %p173, %p174
      %p176 = scmp.ne.s32.totalorder %s168, %s171
      %p177 = scmp.eq.s32.totalorder %s14, 0
      %p178 = por %p176, %p177
      %p179 = scmp.ne.s32.totalorder %s168, %s171
      %p180 = scmp.eq.s32.totalorder %s19, 1
      %p181 = por %p179, %p180
      %p182 = scmp.ne.s32.totalorder %s171, %s172
      %p183 = scmp.eq.s32.totalorder %s19, 0
      %p184 = por %p182, %p183
      %p185 = scmp.ne.s32.totalorder %s171, %s172
      %p186 = scmp.eq.s32.totalorder %s20, 1
      %p187 = por %p185, %p186
      %p189 = scmp.ne.s32.totalorder %s172, %s188
      %p190 = scmp.eq.s32.totalorder %s20, 0
      %p191 = por %p189, %p190
      %p192 = scmp.le.s32.totalorder 1, %s14
      %p193 = scmp.lt.s32.totalorder %s14, 3
      %p194 = pnand %p192, %p193
      %p195 = pneg %p194
      // Predicated region
      $region9: #{tpu_custom_call.1} parent=5 // pred_check
        _
      $region10: #{tpu_custom_call.1} parent=5 // pred_check_branch
        %197 = sbr.rel (%p194) target = $region12
      $region11: #{tpu_custom_call.1} parent=5 // pred_region
        %s198 = ssub.s32 %s14, 1
        // Predicated region
        $region13: #{tpu_custom_call.1} parent=11 // pred_check
          %p199 = pneg %p52
        $region14: #{tpu_custom_call.1} parent=11 // pred_check_branch
          %201 = sbr.rel (%p199) target = $region16
        $region15: #{tpu_custom_call.1} parent=11 // pred_region
          %s202 = smul.u32 2, %s24
          %p203 = scmp.lt.s32.totalorder %s202, 1
          %s204 = scalar_select %p203, %s202, 1
          %s205 = smul.addr %s204, 8
          %s206 = scalar_lea.vmem %s0, %s205
          %s207 = smul.u32 2, %s24
        $region16: #{tpu_custom_call.1} parent=11 // pred_fallthru
          _
      $region12: #{tpu_custom_call.1} parent=5 // pred_fallthru
        _
      %p208 = scmp.lt.s32.totalorder %s14, 2
      // Predicated region
      $region17: #{tpu_custom_call.1} parent=5 // pred_check
        %p209 = pneg %p208
      $region18: #{tpu_custom_call.1} parent=5 // pred_check_branch
        %211 = sbr.rel (%p209) target = $region20
      $region19: #{tpu_custom_call.1} parent=5 // pred_region
        // Predicated region
        $region21: #{tpu_custom_call.1} parent=19 // pred_check
          %p212 = pneg %p72
        $region22: #{tpu_custom_call.1} parent=19 // pred_check_branch
          %214 = sbr.rel (%p212) target = $region24
        $region23: #{tpu_custom_call.1} parent=19 // pred_region
          %p215 = scmp.lt.s32.totalorder %s21, 1
          %s216 = scalar_select %p215, %s21, 1
          %s217 = smul.addr %s216, 4
          %s218 = smul.addr %s217, 8
          %s219 = scalar_lea.vmem %s1, %s218
        $region24: #{tpu_custom_call.1} parent=19 // pred_fallthru
          _
        // Predicated region
        $region25: #{tpu_custom_call.1} parent=19 // pred_check
          %p220 = pneg %p98
        $region26: #{tpu_custom_call.1} parent=19 // pred_check_branch
          %222 = sbr.rel (%p220) target = $region28
        $region27: #{tpu_custom_call.1} parent=19 // pred_region
          %p223 = scmp.lt.s32.totalorder %s21, 1
          %s224 = scalar_select %p223, %s21, 1
          %s225 = smul.addr %s224, 4
          %s226 = smul.addr %s225, 8
          %s227 = scalar_lea.vmem %s2, %s226
        $region28: #{tpu_custom_call.1} parent=19 // pred_fallthru
          _
        // Predicated region
        $region29: #{tpu_custom_call.1} parent=19 // pred_check
          %p228 = pneg %p124
        $region30: #{tpu_custom_call.1} parent=19 // pred_check_branch
          %230 = sbr.rel (%p228) target = $region32
        $region31: #{tpu_custom_call.1} parent=19 // pred_region
          %p231 = scmp.lt.s32.totalorder %s21, 1
          %s232 = scalar_select %p231, %s21, 1
          %s233 = scalar_lea.vmem %s3, %s232
        $region32: #{tpu_custom_call.1} parent=19 // pred_fallthru
          _
        // Predicated region
        $region33: #{tpu_custom_call.1} parent=19 // pred_check
          %p234 = pneg %p150
        $region34: #{tpu_custom_call.1} parent=19 // pred_check_branch
          %236 = sbr.rel (%p234) target = $region36
        $region35: #{tpu_custom_call.1} parent=19 // pred_region
          %p237 = scmp.lt.s32.totalorder %s21, 1
          %s238 = scalar_select %p237, %s21, 1
          %s239 = scalar_lea.vmem %s4, %s238
        $region36: #{tpu_custom_call.1} parent=19 // pred_fallthru
          _
      $region20: #{tpu_custom_call.1} parent=5 // pred_fallthru
        _
      %p240 = scmp.le.s32.totalorder 1, %s14
      %p241 = scmp.lt.s32.totalorder %s14, 3
      %p242 = pnand %p240, %p241
      %p243 = pneg %p242
      // Predicated region
      $region37: #{tpu_custom_call.1} parent=5 // pred_check
        _
      $region38: #{tpu_custom_call.1} parent=5 // pred_check_branch
        %245 = sbr.rel (%p242) target = $region40
      $region39: #{tpu_custom_call.1} parent=5 // pred_region
        %s246 = ssub.s32 %s14, 1
        %s247 = smul.u32 2, %s24
        %p248 = scmp.lt.s32.totalorder %s247, 1
        %s249 = scalar_select %p248, %s247, 1
        %s250 = smul.addr %s249, 8
        %s251 = scalar_lea.vmem %s0, %s250
        %p252 = pneg %p52
        %p253 = pneg %p49
        %p254 = scmp.lt.s32.totalorder %s23, 1
        %s255 = scalar_select %p254, %s23, 1
        %s256 = smul.addr %s255, 4
        %s257 = smul.addr %s256, 8
        %s258 = scalar_lea.vmem %s1, %s257
        %p259 = pneg %p78
        %p260 = pneg %p75
        %p261 = scmp.lt.s32.totalorder %s23, 1
        %s262 = scalar_select %p261, %s23, 1
        %s263 = smul.addr %s262, 4
        %s264 = smul.addr %s263, 8
        %s265 = scalar_lea.vmem %s2, %s264
        %p266 = pneg %p104
        %p267 = pneg %p101
        %p268 = scmp.lt.s32.totalorder %s23, 1
        %s269 = scalar_select %p268, %s23, 1
        %s270 = scalar_lea.vmem %s3, %s269
        %p271 = pneg %p130
        %p272 = pneg %p127
        %p273 = scmp.lt.s32.totalorder %s23, 1
        %s274 = scalar_select %p273, %s23, 1
        %s275 = scalar_lea.vmem %s4, %s274
        %p276 = pneg %p156
        %p277 = pneg %p153
        %p278 = pneg %p184
        %p279 = pneg %p181
        %s280 = sand.u32 %s171, 1
        %s281 = scalar_lea.sflag [#allocation3], %s280
        %s282 = sand.u32 %s171, 1
        %s283 = smul.addr %s282, 16
        %s284 = scalar_lea.vmem [#allocation2], %s283
        %s285 = smul.u32 2, %s24
        %p286 = scmp.lt.s32.totalorder %s285, 1
        %s287 = scalar_select %p286, %s285, 1
        %s288 = smul.addr %s287, 8
        %s289 = scalar_lea.vmem %s0, %s288
        %s290 = smul.u32 2, %s24
        %p291 = scmp.lt.s32.totalorder %s23, 1
        %s292 = scalar_select %p291, %s23, 1
        %s293 = smul.addr %s292, 4
        %s294 = smul.addr %s293, 8
        %s295 = scalar_lea.vmem %s1, %s294
        %p296 = scmp.lt.s32.totalorder %s23, 1
        %s297 = scalar_select %p296, %s23, 1
        %s298 = smul.addr %s297, 4
        %s299 = smul.addr %s298, 8
        %s300 = scalar_lea.vmem %s2, %s299
        %p301 = scmp.lt.s32.totalorder %s23, 1
        %s302 = scalar_select %p301, %s23, 1
        %s303 = scalar_lea.vmem %s3, %s302
        %p304 = scmp.lt.s32.totalorder %s23, 1
        %s305 = scalar_select %p304, %s23, 1
        %s306 = scalar_lea.vmem %s4, %s305
        %s307 = smul.u32 2, %s24
        %v308 = vld [vmem:[%s289] sm:$0xff]
        %v309 = vld [vmem:[%s289 + $0x8] sm:$0xff]
        %v310 = vld [vmem:[%s295] sm:$0xff]
        %v311 = vld [vmem:[%s295 + $0x8] sm:$0xff]
        %v312 = vld [vmem:[%s295 + $0x10] sm:$0xff]
        %v313 = vld [vmem:[%s295 + $0x18] sm:$0x3f]
        %v314 = vld [vmem:[%s300] sm:$0xff]
        %v315 = vld [vmem:[%s300 + $0x8] sm:$0xff]
        %v316 = vld [vmem:[%s300 + $0x10] sm:$0xff]
        %v317 = vld [vmem:[%s300 + $0x18] sm:$0x3f]
        %v318 = vld [vmem:[%s303] sm:$0x1]
        %v320 = vlaneseq
        %v321 = vshrl.u32 %v320, 7
        %v322 = vsub.s32 0, %v321
        %v323 = vrot.slane %v318, %v322
        %vm325 = vcmask 244736
        %v327 = vsel %vm325, %v308, 0
        %v330 = vsel %vm325, %v309, 0
        %v333 = vsel %vm325, %v310, 0
        %v336 = vsel %vm325, %v311, 0
        %v339 = vsel %vm325, %v312, 0
        %v342 = vsel %vm325, %v313, 0
        %344 = vmatprep.subr.mxu0 0.0
        %345 = vmatpush1.xpose.msra.mxu0 %v333
        %346 = vmatprep.subr.mxu0 0.0
        %347 = vmatpush1.xpose.msra.mxu0 %v336
        %348 = vmatprep.subr.mxu0 0.0
        %349 = vmatpush1.xpose.msra.mxu0 %v339
        %350 = vmatprep.subr.mxu0 0.0
        %351 = vmatpush1.xpose.msra.mxu0 %v342
        %352 = vmatprep.subr.mxu0 0.0
        %353 = vmatpush1.xpose.msra.mxu0 0.0
        %354 = vmatprep.subr.mxu0 0.0
        %355 = vmatpush1.xpose.msra.mxu0 0.0
        %356 = vmatprep.subr.mxu0 0.0
        %357 = vmatpush1.xpose.msra.mxu0 0.0
        %358 = vmatprep.subr.mxu0 0.0
        %359 = vmatpush1.xpose.msra.mxu0 0.0
        %360 = vmatprep.subr.mxu0 0.0
        %361 = vmatpush1.xpose.msra.mxu0 0.0
        %362 = vmatprep.subr.mxu0 0.0
        %363 = vmatpush1.xpose.msra.mxu0 0.0
        %364 = vmatprep.subr.mxu0 0.0
        %365 = vmatpush1.xpose.msra.mxu0 0.0
        %366 = vmatprep.subr.mxu0 0.0
        %367 = vmatpush1.xpose.msra.mxu0 0.0
        %368 = vmatprep.subr.mxu0 0.0
        %369 = vmatpush1.xpose.msra.mxu0 0.0
        %370 = vmatprep.subr.mxu0 0.0
        %371 = vmatpush1.xpose.msra.mxu0 0.0
        %372 = vmatprep.subr.mxu0 0.0
        %373 = vmatpush1.xpose.msra.mxu0 0.0
        %374 = vmatprep.subr.mxu0 0.0
        %375 = vmatpush1.xpose.msra.mxu0 0.0
        %376 = vmatprep.subr.mxu0 0.0
        %377 = vmatpush1.xpose.msra.mxu0 0.0
        %378 = vmatprep.subr.mxu0 0.0
        %379 = vmatpush1.xpose.msra.mxu0 0.0
        %380 = vmatprep.subr.mxu0 0.0
        %381 = vmatpush1.xpose.msra.mxu0 0.0
        %382 = vmatprep.subr.mxu0 0.0
        %383 = vmatpush1.xpose.msra.mxu0 0.0
        %384 = vmatprep.subr.mxu0 0.0
        %385 = vmatpush1.xpose.msra.mxu0 0.0
        %386 = vmatprep.subr.mxu0 0.0
        %387 = vmatpush1.xpose.msra.mxu0 0.0
        %388 = vmatprep.subr.mxu0 0.0
        %389 = vmatpush1.xpose.msra.mxu0 0.0
        %390 = vmatprep.subr.mxu0 0.0
        %391 = vmatpush1.xpose.msra.mxu0 0.0
        %392 = vmatprep.subr.mxu0 0.0
        %393 = vmatpush1.xpose.msra.mxu0 0.0
        %394 = vmatprep.subr.mxu0 0.0
        %395 = vmatpush1.xpose.msra.mxu0 0.0
        %396 = vmatprep.subr.mxu0 0.0
        %397 = vmatpush1.xpose.msra.mxu0 0.0
        %398 = vmatprep.subr.mxu0 0.0
        %399 = vmatpush1.xpose.msra.mxu0 0.0
        %400 = vmatprep.subr.mxu0 0.0
        %401 = vmatpush1.xpose.msra.mxu0 0.0
        %402 = vmatprep.subr.mxu0 0.0
        %403 = vmatpush1.xpose.msra.mxu0 0.0
        %404 = vmatprep.subr.mxu0 0.0
        %405 = vmatpush1.xpose.msra.mxu0 0.0
        %406 = vmatprep.subr.mxu0 0.0
        %407 = vmatpush1.xpose.msra.mxu0 0.0
        %408 = vmatprep.mubr.f32.mxu0 0.0
        %409 = vmatmul.mubr.f32.gmra.mrb[0].mxu0 %v327
        %v410 = vpop.f32.mrb[0].mxu0
        %v411 = vadd.f32 %v323, %v410
        %v412 = vpop.f32.mrb[0].mxu0
        %413 = vmatprep.mubr.f32.mxu0 0.0
        %414 = vmatmul.mubr.f32.gmra.mrb[0].mxu0 %v330
        %v415 = vpop.f32.mrb[0].mxu0
        %v416 = vadd.f32 %v323, %v415
        %v417 = vpop.f32.mrb[0].mxu0
        %418 = vdwg.mxu0
        %v419 = vld [vmem:[%s306] sm:$0x1]
        %v421 = vlaneseq
        %v422 = vshrl.u32 %v421, 7
        %v423 = vsub.s32 0, %v422
        %v424 = vrot.slane %v419, %v423
        %v427 = vsel %vm325, %v314, 0
        %v430 = vsel %vm325, %v315, 0
        %v433 = vsel %vm325, %v316, 0
        %v436 = vsel %vm325, %v317, 0
        %438 = vmatprep.subr.mxu0 0.0
        %439 = vmatpush1.xpose.msra.mxu0 %v427
        %440 = vmatprep.subr.mxu0 0.0
        %441 = vmatpush1.xpose.msra.mxu0 %v430
        %442 = vmatprep.subr.mxu0 0.0
        %443 = vmatpush1.xpose.msra.mxu0 %v433
        %444 = vmatprep.subr.mxu0 0.0
        %445 = vmatpush1.xpose.msra.mxu0 %v436
        %446 = vmatprep.subr.mxu0 0.0
        %447 = vmatpush1.xpose.msra.mxu0 0.0
        %448 = vmatprep.subr.mxu0 0.0
        %449 = vmatpush1.xpose.msra.mxu0 0.0
        %450 = vmatprep.subr.mxu0 0.0
        %451 = vmatpush1.xpose.msra.mxu0 0.0
        %452 = vmatprep.subr.mxu0 0.0
        %453 = vmatpush1.xpose.msra.mxu0 0.0
        %454 = vmatprep.subr.mxu0 0.0
        %455 = vmatpush1.xpose.msra.mxu0 0.0
        %456 = vmatprep.subr.mxu0 0.0
        %457 = vmatpush1.xpose.msra.mxu0 0.0
        %458 = vmatprep.subr.mxu0 0.0
        %459 = vmatpush1.xpose.msra.mxu0 0.0
        %460 = vmatprep.subr.mxu0 0.0
        %461 = vmatpush1.xpose.msra.mxu0 0.0
        %462 = vmatprep.subr.mxu0 0.0
        %463 = vmatpush1.xpose.msra.mxu0 0.0
        %464 = vmatprep.subr.mxu0 0.0
        %465 = vmatpush1.xpose.msra.mxu0 0.0
        %466 = vmatprep.subr.mxu0 0.0
        %467 = vmatpush1.xpose.msra.mxu0 0.0
        %468 = vmatprep.subr.mxu0 0.0
        %469 = vmatpush1.xpose.msra.mxu0 0.0
        %470 = vmatprep.subr.mxu0 0.0
        %471 = vmatpush1.xpose.msra.mxu0 0.0
        %472 = vmatprep.subr.mxu0 0.0
        %473 = vmatpush1.xpose.msra.mxu0 0.0
        %474 = vmatprep.subr.mxu0 0.0
        %475 = vmatpush1.xpose.msra.mxu0 0.0
        %476 = vmatprep.subr.mxu0 0.0
        %477 = vmatpush1.xpose.msra.mxu0 0.0
        %478 = vmatprep.subr.mxu0 0.0
        %479 = vmatpush1.xpose.msra.mxu0 0.0
        %480 = vmatprep.subr.mxu0 0.0
        %481 = vmatpush1.xpose.msra.mxu0 0.0
        %482 = vmatprep.subr.mxu0 0.0
        %483 = vmatpush1.xpose.msra.mxu0 0.0
        %484 = vmatprep.subr.mxu0 0.0
        %485 = vmatpush1.xpose.msra.mxu0 0.0
        %486 = vmatprep.subr.mxu0 0.0
        %487 = vmatpush1.xpose.msra.mxu0 0.0
        %488 = vmatprep.subr.mxu0 0.0
        %489 = vmatpush1.xpose.msra.mxu0 0.0
        %490 = vmatprep.subr.mxu0 0.0
        %491 = vmatpush1.xpose.msra.mxu0 0.0
        %492 = vmatprep.subr.mxu0 0.0
        %493 = vmatpush1.xpose.msra.mxu0 0.0
        %494 = vmatprep.subr.mxu0 0.0
        %495 = vmatpush1.xpose.msra.mxu0 0.0
        %496 = vmatprep.subr.mxu0 0.0
        %497 = vmatpush1.xpose.msra.mxu0 0.0
        %498 = vmatprep.subr.mxu0 0.0
        %499 = vmatpush1.xpose.msra.mxu0 0.0
        %500 = vmatprep.subr.mxu0 0.0
        %501 = vmatpush1.xpose.msra.mxu0 0.0
        %502 = vmatprep.mubr.f32.mxu0 0.0
        %503 = vmatmul.mubr.f32.gmra.mrb[0].mxu0 %v327
        %v504 = vpop.f32.mrb[0].mxu0
        %v505 = vadd.f32 %v424, %v504
        %v506 = vpop.f32.mrb[0].mxu0
        %507 = vmatprep.mubr.f32.mxu0 0.0
        %508 = vmatmul.mubr.f32.gmra.mrb[0].mxu0 %v330
        %v509 = vpop.f32.mrb[0].mxu0
        %v510 = vadd.f32 %v424, %v509
        %v511 = vpop.f32.mrb[0].mxu0
        %512 = vdwg.mxu0
        %v513 = vxor.u32 %v411, 2147483648
        %v514 = vxor.u32 %v416, 2147483648
        %v515 = vmul.f32 %v513, 1.442695
        %v516 = vpow.pop %v515
        %v517 = vmul.f32 %v514, 1.442695
        %v518 = vpow.pop %v517
        %v519 = vadd.f32 %v516, 1.0
        %v520 = vadd.f32 %v518, 1.0
        %v521 = vrcp.pop %v519
        %v522 = vmul.f32 1.0, %v521
        %v523 = vrcp.pop %v520
        %v524 = vmul.f32 1.0, %v523
        %v525 = vtanh.pop %v505
        %v526 = vtanh.pop %v510
        %v527 = vmul.f32 %v522, %v525
        %v528 = vmul.f32 %v524, %v526
        %529 = vst.msk [vmem:[%s284] sm:$0xff] %vm325, %v527
        %530 = vst.msk [vmem:[%s284 + $0x8] sm:$0xff] %vm325, %v528
        %s531 = sand.u32 %s171, 1
        %s532 = scalar_lea.sflag [#allocation3], %s531
        %s533 = sand.u32 %s171, 1
        %s534 = smul.addr %s533, 16
        %s535 = scalar_lea.vmem [#allocation2], %s534
        // Predicated region
        $region41: #{tpu_custom_call.1} parent=39 // pred_check
          %p536 = pneg %p181
        $region42: #{tpu_custom_call.1} parent=39 // pred_check_branch
          %538 = sbr.rel (%p536) target = $region44
        $region43: #{tpu_custom_call.1} parent=39 // pred_region
          %s539 = smul.u32 2, %s24
          %s541 = ssub.s32 256, 256
          %542 = vsyncadd %s532, %s541
          %s543 = smul.addr %s23, 2
          %s544 = sadd.s32 %s539, %s543
          %s545 = smul.addr %s544, 128
          %s546 = scalar_lea.hbm %s5, %s545
          %s547 = sshll.u32 %s535, 4
          %s548 = int_to_ptr.vmem [resolvable:$true] %s547
          %553 = dma.vmem_to_hbm [thread:$0]  %s548, 256, %s546, %s532, 128, 128, 8
        $region44: #{tpu_custom_call.1} parent=39 // pred_fallthru
          _
      $region40: #{tpu_custom_call.1} parent=5 // pred_fallthru
        _
      %p554 = scmp.le.s32.totalorder 2, %s14
      // Predicated region
      $region45: #{tpu_custom_call.1} parent=5 // pred_check
        %p555 = pneg %p554
      $region46: #{tpu_custom_call.1} parent=5 // pred_check_branch
        %557 = sbr.rel (%p555) target = $region48
      $region47: #{tpu_custom_call.1} parent=5 // pred_region
        %s558 = ssub.s32 %s14, 2
        // Predicated region
        $region49: #{tpu_custom_call.1} parent=47 // pred_check
          %p559 = pneg %p187
        $region50: #{tpu_custom_call.1} parent=47 // pred_check_branch
          %561 = sbr.rel (%p559) target = $region52
        $region51: #{tpu_custom_call.1} parent=47 // pred_region
          %s562 = sand.u32 %s172, 1
          %s563 = scalar_lea.sflag [#allocation3], %s562
          %s564 = sand.u32 %s172, 1
          %s565 = smul.addr %s564, 16
          %s566 = scalar_lea.vmem [#allocation2], %s565
          %567 = dma.done %s563, 256
        $region52: #{tpu_custom_call.1} parent=47 // pred_fallthru
          _
      $region48: #{tpu_custom_call.1} parent=5 // pred_fallthru
        _
    $region6: #{tpu_custom_call.1} parent=1 // loop_footer
      %s18 = sadd.s32 1, %s14
    $region7: #{tpu_custom_call.1} parent=1 // loop_footer_branch
      %13 = sbr.rel target = $region3
    $region8: #{tpu_custom_call.1} parent=1 // loop_exit
      _
    %568 = vsyncpa [#allocation3], 1
    %s569 = scalar_lea.sflag [#allocation3], 1
    %570 = vsyncpa %s569, 1

</llo_original>
